<compile_context>
chip_gen: v6e
topology: v6e:2x2x1
jax: 0.10.0
libtpu: 0.0.40
codegen_flags: <defaults>
</compile_context>

<pallas_src>
import jax
import jax.numpy as jnp
from jax import lax
from jax.experimental import pallas as pl
from jax.experimental.pallas import tpu as pltpu


def _cdiv(a, b):
    return -(-a // b)


def _round_up(n, m):
    return _cdiv(n, m) * m


def _choose_tiling(batch, block_batch):
    """Return (tile_batch, padded_batch); tile is a multiple of 128 and
    divides padded_batch exactly, with padding waste < 128 rows per tile."""
    cap = max(128, (block_batch // 128) * 128)       # force multiple of 128
    padded_min = _round_up(batch, 128)
    if padded_min <= cap:                            # single full tile
        return padded_min, padded_min
    num_tiles = _cdiv(padded_min, cap)
    tb = _round_up(_cdiv(batch, num_tiles), 128)     # tb <= cap by construction
    return tb, tb * num_tiles


def mlp_kernel(x_ref, w1_ref, b1_ref, w2_ref, b2_ref, w3_ref, b3_ref,
               w4_ref, b4_ref, o_ref):
    # x_ref is (TB, in) with batch on sublanes; layer 1 moves batch onto the
    # 128-lane axis and it stays there for all later layers and the store.
    def sigmoid(h):
        # Single EUP transcendental per activation (matches logistic exactly).
        return 0.5 * (jnp.tanh(0.5 * h) + 1.0)

    x = x_ref[...].astype(jnp.float32)                                  # (TB, in)
    # Layer 1: w1 @ x.T as an NT contraction (no explicit transpose needed;
    # the MXU takes the transposed operand).
    h = lax.dot_general(w1_ref[...], x,
                        dimension_numbers=(((1,), (1,)), ((), ())),
                        preferred_element_type=jnp.float32)             # (hid, TB)
    h = sigmoid(h + b1_ref[...])
    h = sigmoid(jnp.dot(w2_ref[...], h,
                        preferred_element_type=jnp.float32) + b2_ref[...])
    h = sigmoid(jnp.dot(w3_ref[...], h,
                        preferred_element_type=jnp.float32) + b3_ref[...])
    out = jnp.dot(w4_ref[...], h,
                  preferred_element_type=jnp.float32) + b4_ref[...]     # (out, TB)
    o_ref[...] = out.astype(o_ref.dtype)


def mlp_forward(x, params, *, block_batch=8192):
    """x: (batch, in_features) -> (batch, out_features).

    params: PyTorch-layout weights w1..w4 of shape (out, in) and biases
    b1..b4 stored as (out, 1) column vectors (broadcast along lanes inside
    the kernel's transposed activation layout).
    """
    batch, in_features = x.shape
    out_features = params["w4"].shape[0]

    tb, padded = _choose_tiling(batch, block_batch)
    if padded != batch:
        x = jnp.pad(x, ((0, padded - batch), (0, 0)))
    grid = (padded // tb,)

    def x_map(i):              # walk batch tiles along the sublane axis of x
        return (i, 0)

    def out_map(i):            # walk batch tiles along the lane axis of out
        return (0, i)

    def const_map(i):          # weights / biases: VMEM-resident across steps
        return (0, 0)

    in_specs = [
        pl.BlockSpec((tb, in_features), x_map),              # x    (TB, in)
        pl.BlockSpec(params["w1"].shape, const_map),         # w1   (hid, in)
        pl.BlockSpec(params["b1"].shape, const_map),         # b1   (hid, 1)
        pl.BlockSpec(params["w2"].shape, const_map),         # w2   (hid, hid)
        pl.BlockSpec(params["b2"].shape, const_map),         # b2   (hid, 1)
        pl.BlockSpec(params["w3"].shape, const_map),         # w3   (hid, hid)
        pl.BlockSpec(params["b3"].shape, const_map),         # b3   (hid, 1)
        pl.BlockSpec(params["w4"].shape, const_map),         # w4   (out, hid)
        pl.BlockSpec(params["b4"].shape, const_map),         # b4   (out, 1)
    ]

    out_t = pl.pallas_call(
        mlp_kernel,
        out_shape=jax.ShapeDtypeStruct((out_features, padded), x.dtype),
        grid_spec=pl.GridSpec(
            grid=grid,
            in_specs=in_specs,
            out_specs=pl.BlockSpec((out_features, tb), out_map),
        ),
        compiler_params=pltpu.CompilerParams(
            # Batch tiles are independent: megacore on v7x, pipelining everywhere.
            dimension_semantics=("parallel",),
            # Per-step working set at tb=8192 (incl. the lane-padded (TB,4)
            # input block, double-buffered) is ~10 MiB: under this limit on
            # v5e/v6e/v7x alike.
            vmem_limit_bytes=32 * 1024 * 1024,
        ),
    )(x, params["w1"], params["b1"], params["w2"], params["b2"],
      params["w3"], params["b3"], params["w4"], params["b4"])

    # Drop padded lanes; (out_features, batch) -> (batch, out_features) is a
    # trivial (out_features==1) relabel for XLA, not a data-movement pass.
    return jnp.transpose(out_t[:, :batch])


def xavier_normal(key, out_features, in_features):
    # Matches torch.nn.init.xavier_normal_ on a (out, in) weight.
    std = (2.0 / (in_features + out_features)) ** 0.5
    return std * jax.random.normal(key, (out_features, in_features),
                                   dtype=jnp.float32)


def init_params(key, input_size=4, hidden_size=15, output_size=1):
    keys = jax.random.split(key, 4)
    dims = [(hidden_size, input_size),
            (hidden_size, hidden_size),
            (hidden_size, hidden_size),
            (output_size, hidden_size)]
    params = {}
    for i, ((out_f, in_f), k) in enumerate(zip(dims, keys), start=1):
        params[f"w{i}"] = xavier_normal(k, out_f, in_f)        # (out, in) like nn.Linear
        params[f"b{i}"] = jnp.zeros((out_f, 1), jnp.float32)   # zeros_(bias), column vec
    return params


def reference_forward(x, params):
    # Pure-JAX reference in the standard (batch, features) layout.
    h = jax.nn.sigmoid(x @ params["w1"].T + params["b1"].T)
    h = jax.nn.sigmoid(h @ params["w2"].T + params["b2"].T)
    h = jax.nn.sigmoid(h @ params["w3"].T + params["b3"].T)
    return h @ params["w4"].T + params["b4"].T


if __name__ == "__main__":
    key = jax.random.PRNGKey(0)
    pkey, xkey = jax.random.split(key)

    input_size, hidden_size, output_size = 4, 15, 1
    batch = 300  # not a multiple of 128 -> exercises the bounded-padding path

    params = init_params(pkey, input_size, hidden_size, output_size)
    x = jax.random.normal(xkey, (batch, input_size), dtype=jnp.float32)

    ref = reference_forward(x, params)

    # Default (large-tile) path: single 384-lane tile covers the whole batch.
    out = jax.block_until_ready(mlp_forward(x, params))
    assert out.shape == (batch, output_size)
    assert jnp.allclose(out, ref, atol=1e-4, rtol=1e-4), "mismatch (single tile)"

    # Multi-tile path: forces a 2-step grid with 256-lane tiles + padding.
    out2 = jax.block_until_ready(mlp_forward(x, params, block_batch=256))
    assert jnp.allclose(out2, ref, atol=1e-4, rtol=1e-4), "mismatch (multi tile)"

    print("KERNEL_OK")
</pallas_src>

<mosaic_0001>
module attributes {stable_mosaic.version = 11 : i64} {
  func.func @mlp_kernel(%arg0: i32, %arg1: memref<384x4xf32, #tpu.memory_space<vmem>>, %arg2: memref<15x4xf32, #tpu.memory_space<vmem>>, %arg3: memref<15x1xf32, #tpu.memory_space<vmem>>, %arg4: memref<15x15xf32, #tpu.memory_space<vmem>>, %arg5: memref<15x1xf32, #tpu.memory_space<vmem>>, %arg6: memref<15x15xf32, #tpu.memory_space<vmem>>, %arg7: memref<15x1xf32, #tpu.memory_space<vmem>>, %arg8: memref<1x15xf32, #tpu.memory_space<vmem>>, %arg9: memref<1x1xf32, #tpu.memory_space<vmem>>, %arg10: memref<1x384xf32, #tpu.memory_space<vmem>>) attributes {dimension_semantics = [#tpu.dimension_semantics<parallel>], iteration_bounds = array<i64: 1>, scalar_prefetch = 0 : i64, scratch_operands = 0 : i64, tpu.core_type = #tpu.core_type<tc>, window_params = [{transform_indices = @transform_0, window_bounds = array<i64: 384, 4>}, {pipeline_mode = #tpu.pipeline_mode<synchronous>, transform_indices = @transform_1, window_bounds = array<i64: 15, 4>}, {pipeline_mode = #tpu.pipeline_mode<synchronous>, transform_indices = @transform_2, window_bounds = array<i64: 15, 1>}, {pipeline_mode = #tpu.pipeline_mode<synchronous>, transform_indices = @transform_3, window_bounds = array<i64: 15, 15>}, {pipeline_mode = #tpu.pipeline_mode<synchronous>, transform_indices = @transform_4, window_bounds = array<i64: 15, 1>}, {pipeline_mode = #tpu.pipeline_mode<synchronous>, transform_indices = @transform_5, window_bounds = array<i64: 15, 15>}, {pipeline_mode = #tpu.pipeline_mode<synchronous>, transform_indices = @transform_6, window_bounds = array<i64: 15, 1>}, {pipeline_mode = #tpu.pipeline_mode<synchronous>, transform_indices = @transform_7, window_bounds = array<i64: 1, 15>}, {pipeline_mode = #tpu.pipeline_mode<synchronous>, transform_indices = @transform_8, window_bounds = array<i64: 1, 1>}, {transform_indices = @transform_9, window_bounds = array<i64: 1, 384>}]} {
    %c0 = arith.constant 0 : index
    %c0_0 = arith.constant 0 : index
    %0 = vector.load %arg1[%c0, %c0_0] : memref<384x4xf32, #tpu.memory_space<vmem>>, vector<384x4xf32>
    %c0_1 = arith.constant 0 : index
    %c0_2 = arith.constant 0 : index
    %1 = vector.load %arg2[%c0_1, %c0_2] : memref<15x4xf32, #tpu.memory_space<vmem>>, vector<15x4xf32>
    %cst = arith.constant dense<0.000000e+00> : vector<15x384xf32>
    %2 = tpu.matmul %1, %0, %cst {dimension_numbers = #tpu.dot_dimension_numbers<[1], [1], [0], [0], [0, 0, 1, 0], [], []>} : vector<15x4xf32>, vector<384x4xf32>, vector<15x384xf32> -> vector<15x384xf32>
    %c0_3 = arith.constant 0 : index
    %c0_4 = arith.constant 0 : index
    %3 = vector.load %arg3[%c0_3, %c0_4] : memref<15x1xf32, #tpu.memory_space<vmem>>, vector<15x1xf32>
    %4 = vector.broadcast %3 : vector<15x1xf32> to vector<15x384xf32>
    %5 = arith.addf %2, %4 : vector<15x384xf32>
    %cst_5 = arith.constant 5.000000e-01 : f32
    %6 = vector.broadcast %cst_5 : f32 to vector<15x384xf32>
    %7 = arith.mulf %6, %5 : vector<15x384xf32>
    %8 = math.tanh %7 : vector<15x384xf32>
    %cst_6 = arith.constant 1.000000e+00 : f32
    %9 = vector.broadcast %cst_6 : f32 to vector<15x384xf32>
    %10 = arith.addf %8, %9 : vector<15x384xf32>
    %cst_7 = arith.constant 5.000000e-01 : f32
    %11 = vector.broadcast %cst_7 : f32 to vector<15x384xf32>
    %12 = arith.mulf %11, %10 : vector<15x384xf32>
    %c0_8 = arith.constant 0 : index
    %c0_9 = arith.constant 0 : index
    %13 = vector.load %arg4[%c0_8, %c0_9] : memref<15x15xf32, #tpu.memory_space<vmem>>, vector<15x15xf32>
    %cst_10 = arith.constant dense<0.000000e+00> : vector<15x384xf32>
    %14 = tpu.matmul %13, %12, %cst_10 {dimension_numbers = #tpu.dot_dimension_numbers<[1], [0], [0], [1], [0, 0, 1, 1], [], []>} : vector<15x15xf32>, vector<15x384xf32>, vector<15x384xf32> -> vector<15x384xf32>
    %c0_11 = arith.constant 0 : index
    %c0_12 = arith.constant 0 : index
    %15 = vector.load %arg5[%c0_11, %c0_12] : memref<15x1xf32, #tpu.memory_space<vmem>>, vector<15x1xf32>
    %16 = vector.broadcast %15 : vector<15x1xf32> to vector<15x384xf32>
    %17 = arith.addf %14, %16 : vector<15x384xf32>
    %cst_13 = arith.constant 5.000000e-01 : f32
    %18 = vector.broadcast %cst_13 : f32 to vector<15x384xf32>
    %19 = arith.mulf %18, %17 : vector<15x384xf32>
    %20 = math.tanh %19 : vector<15x384xf32>
    %cst_14 = arith.constant 1.000000e+00 : f32
    %21 = vector.broadcast %cst_14 : f32 to vector<15x384xf32>
    %22 = arith.addf %20, %21 : vector<15x384xf32>
    %cst_15 = arith.constant 5.000000e-01 : f32
    %23 = vector.broadcast %cst_15 : f32 to vector<15x384xf32>
    %24 = arith.mulf %23, %22 : vector<15x384xf32>
    %c0_16 = arith.constant 0 : index
    %c0_17 = arith.constant 0 : index
    %25 = vector.load %arg6[%c0_16, %c0_17] : memref<15x15xf32, #tpu.memory_space<vmem>>, vector<15x15xf32>
    %cst_18 = arith.constant dense<0.000000e+00> : vector<15x384xf32>
    %26 = tpu.matmul %25, %24, %cst_18 {dimension_numbers = #tpu.dot_dimension_numbers<[1], [0], [0], [1], [0, 0, 1, 1], [], []>} : vector<15x15xf32>, vector<15x384xf32>, vector<15x384xf32> -> vector<15x384xf32>
    %c0_19 = arith.constant 0 : index
    %c0_20 = arith.constant 0 : index
    %27 = vector.load %arg7[%c0_19, %c0_20] : memref<15x1xf32, #tpu.memory_space<vmem>>, vector<15x1xf32>
    %28 = vector.broadcast %27 : vector<15x1xf32> to vector<15x384xf32>
    %29 = arith.addf %26, %28 : vector<15x384xf32>
    %cst_21 = arith.constant 5.000000e-01 : f32
    %30 = vector.broadcast %cst_21 : f32 to vector<15x384xf32>
    %31 = arith.mulf %30, %29 : vector<15x384xf32>
    %32 = math.tanh %31 : vector<15x384xf32>
    %cst_22 = arith.constant 1.000000e+00 : f32
    %33 = vector.broadcast %cst_22 : f32 to vector<15x384xf32>
    %34 = arith.addf %32, %33 : vector<15x384xf32>
    %cst_23 = arith.constant 5.000000e-01 : f32
    %35 = vector.broadcast %cst_23 : f32 to vector<15x384xf32>
    %36 = arith.mulf %35, %34 : vector<15x384xf32>
    %c0_24 = arith.constant 0 : index
    %c0_25 = arith.constant 0 : index
    %37 = vector.load %arg8[%c0_24, %c0_25] : memref<1x15xf32, #tpu.memory_space<vmem>>, vector<1x15xf32>
    %cst_26 = arith.constant dense<0.000000e+00> : vector<1x384xf32>
    %38 = tpu.matmul %37, %36, %cst_26 {dimension_numbers = #tpu.dot_dimension_numbers<[1], [0], [0], [1], [0, 0, 1, 1], [], []>} : vector<1x15xf32>, vector<15x384xf32>, vector<1x384xf32> -> vector<1x384xf32>
    %c0_27 = arith.constant 0 : index
    %c0_28 = arith.constant 0 : index
    %39 = vector.load %arg9[%c0_27, %c0_28] : memref<1x1xf32, #tpu.memory_space<vmem>>, vector<1x1xf32>
    %40 = vector.broadcast %39 : vector<1x1xf32> to vector<1x384xf32>
    %41 = arith.addf %38, %40 : vector<1x384xf32>
    %c0_29 = arith.constant 0 : index
    %c0_30 = arith.constant 0 : index
    %42 = vector.load %arg10[%c0_29, %c0_30] : memref<1x384xf32, #tpu.memory_space<vmem>>, vector<1x384xf32>
    tpu.vector_store %arg10[%c0_29, %c0_30], %41 {strides = array<i32>} : memref<1x384xf32, #tpu.memory_space<vmem>>, vector<1x384xf32>,
    return
  }
  func.func @transform_0(%arg0: i32) -> (i32, i32) {
    %c0_i32 = arith.constant 0 : i32
    %c0_i32_0 = arith.constant 0 : i32
    return %arg0, %c0_i32 : i32, i32
  }
  func.func @transform_1(%arg0: i32) -> (i32, i32) {
    %c0_i32 = arith.constant 0 : i32
    %c0_i32_0 = arith.constant 0 : i32
    %c0_i32_1 = arith.constant 0 : i32
    return %c0_i32, %c0_i32_0 : i32, i32
  }
  func.func @transform_2(%arg0: i32) -> (i32, i32) {
    %c0_i32 = arith.constant 0 : i32
    %c0_i32_0 = arith.constant 0 : i32
    %c0_i32_1 = arith.constant 0 : i32
    return %c0_i32, %c0_i32_0 : i32, i32
  }
  func.func @transform_3(%arg0: i32) -> (i32, i32) {
    %c0_i32 = arith.constant 0 : i32
    %c0_i32_0 = arith.constant 0 : i32
    %c0_i32_1 = arith.constant 0 : i32
    return %c0_i32, %c0_i32_0 : i32, i32
  }
  func.func @transform_4(%arg0: i32) -> (i32, i32) {
    %c0_i32 = arith.constant 0 : i32
    %c0_i32_0 = arith.constant 0 : i32
    %c0_i32_1 = arith.constant 0 : i32
    return %c0_i32, %c0_i32_0 : i32, i32
  }
  func.func @transform_5(%arg0: i32) -> (i32, i32) {
    %c0_i32 = arith.constant 0 : i32
    %c0_i32_0 = arith.constant 0 : i32
    %c0_i32_1 = arith.constant 0 : i32
    return %c0_i32, %c0_i32_0 : i32, i32
  }
  func.func @transform_6(%arg0: i32) -> (i32, i32) {
    %c0_i32 = arith.constant 0 : i32
    %c0_i32_0 = arith.constant 0 : i32
    %c0_i32_1 = arith.constant 0 : i32
    return %c0_i32, %c0_i32_0 : i32, i32
  }
  func.func @transform_7(%arg0: i32) -> (i32, i32) {
    %c0_i32 = arith.constant 0 : i32
    %c0_i32_0 = arith.constant 0 : i32
    %c0_i32_1 = arith.constant 0 : i32
    return %c0_i32, %c0_i32_0 : i32, i32
  }
  func.func @transform_8(%arg0: i32) -> (i32, i32) {
    %c0_i32 = arith.constant 0 : i32
    %c0_i32_0 = arith.constant 0 : i32
    %c0_i32_1 = arith.constant 0 : i32
    return %c0_i32, %c0_i32_0 : i32, i32
  }
  func.func @transform_9(%arg0: i32) -> (i32, i32) {
    %c0_i32 = arith.constant 0 : i32
    %c0_i32_0 = arith.constant 0 : i32
    return %c0_i32, %arg0 : i32, i32
  }
}

</mosaic_0001>

<llo_original>
// kernel: tpu_custom_call.1
$region0: #{tpu_custom_call.1}
  #allocation0 [shape = 'u32[]', space=smem, size = 0x4, offset = 0x4, fixed_abs, tag = 'smem constant byte address 0x4 - core index']
  #allocation1 [shape = 'u32[144,128]{1,0:T(1,128)}', space=vmem, size = 0x12000, scoped, tag = 'internal scratch']
  #allocation2 [shape = 'f32[1,1]{1,0:T(1,128)S(1)}', space=vmem, size = 0x200, scoped, tag = 'scoped memory for tpu_custom_call.1']
  %s0 = inlined_call_operand.vmem [shape: f32[384,4], index: 0, kind: input, shape index: {}]
  %s1 = inlined_call_operand.vmem [shape: f32[15,4], index: 1, kind: input, shape index: {}]
  %s2 = inlined_call_operand.vmem [shape: f32[15,1], index: 2, kind: input, shape index: {}]
  %s3 = inlined_call_operand.vmem [shape: f32[15,15], index: 3, kind: input, shape index: {}]
  %s4 = inlined_call_operand.vmem [shape: f32[15,1], index: 4, kind: input, shape index: {}]
  %s5 = inlined_call_operand.vmem [shape: f32[15,15], index: 5, kind: input, shape index: {}]
  %s6 = inlined_call_operand.vmem [shape: f32[15,1], index: 6, kind: input, shape index: {}]
  %s7 = inlined_call_operand.vmem [shape: f32[1,15], index: 7, kind: input, shape index: {}]
  %s8 = inlined_call_operand.<no memory space> [shape: f32[1,1], index: 8, kind: input, shape index: {}]
  %s9 = inlined_call_operand.hbm [shape: f32[1,384], index: 9, kind: output, shape index: {}]
  %s10 = sld [smem:[#allocation0]]
  $region46: #{tpu_custom_call.1} parent=0
    _
  %s12 = ssub.s32 1, %s10
  %s13 = scalar_select 0, %s12, %s10
  %v14 = vstv %s8
  %15 = vst [vmem:[#allocation2] sm:$0x1] %v14
  $region1: #{tpu_custom_call.1} parent=0
    #allocation3 [shape = 'u8[1536]{0}', space=vmem, size = 0x800, scoped, tag = 'output window, operand 0, single buffered']
    #allocation4 [shape = 's32[1]{0}', space=sflag, size = 0x4, scoped, tag = 'scoped memory for tpu_custom_call.1']
    %16 = vsyncpa [#allocation4], 0
    // Predicated region
    $region2: #{tpu_custom_call.1} parent=1 // pred_check
      _
    $region3: #{tpu_custom_call.1} parent=1 // pred_check_branch
      %18 = sbr.rel (0) target = $region5
    $region4: #{tpu_custom_call.1} parent=1 // pred_region
      _
    $region5: #{tpu_custom_call.1} parent=1 // pred_fallthru
      _
    // Predicated region
    $region6: #{tpu_custom_call.1} parent=1 // pred_check
      _
    $region7: #{tpu_custom_call.1} parent=1 // pred_check_branch
      %20 = sbr.rel (0) target = $region9
    $region8: #{tpu_custom_call.1} parent=1 // pred_region
      _
    $region9: #{tpu_custom_call.1} parent=1 // pred_fallthru
      _
    // Predicated region
    $region10: #{tpu_custom_call.1} parent=1 // pred_check
      _
    $region11: #{tpu_custom_call.1} parent=1 // pred_check_branch
      %22 = sbr.rel (0) target = $region13
    $region12: #{tpu_custom_call.1} parent=1 // pred_region
      _
    $region13: #{tpu_custom_call.1} parent=1 // pred_fallthru
      _
    // Predicated region
    $region14: #{tpu_custom_call.1} parent=1 // pred_check
      _
    $region15: #{tpu_custom_call.1} parent=1 // pred_check_branch
      %24 = sbr.rel (0) target = $region17
    $region16: #{tpu_custom_call.1} parent=1 // pred_region
      _
    $region17: #{tpu_custom_call.1} parent=1 // pred_fallthru
      _
    // Predicated region
    $region18: #{tpu_custom_call.1} parent=1 // pred_check
      _
    $region19: #{tpu_custom_call.1} parent=1 // pred_check_branch
      %26 = sbr.rel (0) target = $region21
    $region20: #{tpu_custom_call.1} parent=1 // pred_region
      _
    $region21: #{tpu_custom_call.1} parent=1 // pred_fallthru
      _
    // Predicated region
    $region22: #{tpu_custom_call.1} parent=1 // pred_check
      _
    $region23: #{tpu_custom_call.1} parent=1 // pred_check_branch
      %28 = sbr.rel (0) target = $region25
    $region24: #{tpu_custom_call.1} parent=1 // pred_region
      _
    $region25: #{tpu_custom_call.1} parent=1 // pred_fallthru
      _
    // Predicated region
    $region26: #{tpu_custom_call.1} parent=1 // pred_check
      _
    $region27: #{tpu_custom_call.1} parent=1 // pred_check_branch
      %30 = sbr.rel (0) target = $region29
    $region28: #{tpu_custom_call.1} parent=1 // pred_region
      _
    $region29: #{tpu_custom_call.1} parent=1 // pred_fallthru
      _
    // Predicated region
    $region30: #{tpu_custom_call.1} parent=1 // pred_check
      _
    $region31: #{tpu_custom_call.1} parent=1 // pred_check_branch
      %32 = sbr.rel (0) target = $region33
    $region32: #{tpu_custom_call.1} parent=1 // pred_region
      _
    $region33: #{tpu_custom_call.1} parent=1 // pred_fallthru
      _
    // Predicated region
    $region34: #{tpu_custom_call.1} parent=1 // pred_check
      _
    $region35: #{tpu_custom_call.1} parent=1 // pred_check_branch
      %34 = sbr.rel (0) target = $region37
    $region36: #{tpu_custom_call.1} parent=1 // pred_region
      _
    $region37: #{tpu_custom_call.1} parent=1 // pred_fallthru
      _
    %v35 = vld [vmem:[%s0] sm:$0xff]
    %v36 = vld [vmem:[%s0 + $0x8] sm:$0xff]
    %v37 = vld [vmem:[%s0 + $0x10] sm:$0xff]
    %v38 = vld [vmem:[%s0 + $0x18] sm:$0xff]
    %v39 = vld [vmem:[%s0 + $0x20] sm:$0xff]
    %v40 = vld [vmem:[%s0 + $0x28] sm:$0xff]
    %v41 = vld [vmem:[%s0 + $0x30] sm:$0xff]
    %v42 = vld [vmem:[%s0 + $0x38] sm:$0xff]
    %v43 = vld [vmem:[%s0 + $0x40] sm:$0xff]
    %v44 = vld [vmem:[%s0 + $0x48] sm:$0xff]
    %v45 = vld [vmem:[%s0 + $0x50] sm:$0xff]
    %v46 = vld [vmem:[%s0 + $0x58] sm:$0xff]
    %v47 = vld [vmem:[%s0 + $0x60] sm:$0xff]
    %v48 = vld [vmem:[%s0 + $0x68] sm:$0xff]
    %v49 = vld [vmem:[%s0 + $0x70] sm:$0xff]
    %v50 = vld [vmem:[%s0 + $0x78] sm:$0xff]
    %v51 = vld [vmem:[%s0 + $0x80] sm:$0xff]
    %v52 = vld [vmem:[%s0 + $0x88] sm:$0xff]
    %v53 = vld [vmem:[%s0 + $0x90] sm:$0xff]
    %v54 = vld [vmem:[%s0 + $0x98] sm:$0xff]
    %v55 = vld [vmem:[%s0 + $0xa0] sm:$0xff]
    %v56 = vld [vmem:[%s0 + $0xa8] sm:$0xff]
    %v57 = vld [vmem:[%s0 + $0xb0] sm:$0xff]
    %v58 = vld [vmem:[%s0 + $0xb8] sm:$0xff]
    %v59 = vld [vmem:[%s0 + $0xc0] sm:$0xff]
    %v60 = vld [vmem:[%s0 + $0xc8] sm:$0xff]
    %v61 = vld [vmem:[%s0 + $0xd0] sm:$0xff]
    %v62 = vld [vmem:[%s0 + $0xd8] sm:$0xff]
    %v63 = vld [vmem:[%s0 + $0xe0] sm:$0xff]
    %v64 = vld [vmem:[%s0 + $0xe8] sm:$0xff]
    %v65 = vld [vmem:[%s0 + $0xf0] sm:$0xff]
    %v66 = vld [vmem:[%s0 + $0xf8] sm:$0xff]
    %v67 = vld [vmem:[%s0 + $0x100] sm:$0xff]
    %v68 = vld [vmem:[%s0 + $0x108] sm:$0xff]
    %v69 = vld [vmem:[%s0 + $0x110] sm:$0xff]
    %v70 = vld [vmem:[%s0 + $0x118] sm:$0xff]
    %v71 = vld [vmem:[%s0 + $0x120] sm:$0xff]
    %v72 = vld [vmem:[%s0 + $0x128] sm:$0xff]
    %v73 = vld [vmem:[%s0 + $0x130] sm:$0xff]
    %v74 = vld [vmem:[%s0 + $0x138] sm:$0xff]
    %v75 = vld [vmem:[%s0 + $0x140] sm:$0xff]
    %v76 = vld [vmem:[%s0 + $0x148] sm:$0xff]
    %v77 = vld [vmem:[%s0 + $0x150] sm:$0xff]
    %v78 = vld [vmem:[%s0 + $0x158] sm:$0xff]
    %v79 = vld [vmem:[%s0 + $0x160] sm:$0xff]
    %v80 = vld [vmem:[%s0 + $0x168] sm:$0xff]
    %v81 = vld [vmem:[%s0 + $0x170] sm:$0xff]
    %v82 = vld [vmem:[%s0 + $0x178] sm:$0xff]
    %v83 = vld [vmem:[%s1] sm:$0xff]
    %v84 = vld [vmem:[%s1 + $0x8] sm:$0x7f]
    %v85 = vld [vmem:[%s2] sm:$0xff]
    %v86 = vld [vmem:[%s2 + $0x8] sm:$0x7f]
    %88 = vset.pattern.permute.xlu0 0
    %89 = vperm.xlu0 %88, %v85
    %v90 = vpop.permute.xlu0 %89
    %93 = vset.pattern.permute.xlu0 0
    %94 = vperm.xlu0 %93, %v86
    %v95 = vpop.permute.xlu0 %94
    %vm97 = vcmask 31744
    %v99 = vsel %vm97, %v83, 0
    %v102 = vsel %vm97, %v84, 0
    %v105 = vsel %vm97, %v35, 0
    %v108 = vsel %vm97, %v36, 0
    %v111 = vsel %vm97, %v37, 0
    %v114 = vsel %vm97, %v38, 0
    %v117 = vsel %vm97, %v39, 0
    %v120 = vsel %vm97, %v40, 0
    %v123 = vsel %vm97, %v41, 0
    %v126 = vsel %vm97, %v42, 0
    %v129 = vsel %vm97, %v43, 0
    %v132 = vsel %vm97, %v44, 0
    %v135 = vsel %vm97, %v45, 0
    %v138 = vsel %vm97, %v46, 0
    %v141 = vsel %vm97, %v47, 0
    %v144 = vsel %vm97, %v48, 0
    %v147 = vsel %vm97, %v49, 0
    %v150 = vsel %vm97, %v50, 0
    %v153 = vsel %vm97, %v51, 0
    %v156 = vsel %vm97, %v52, 0
    %v159 = vsel %vm97, %v53, 0
    %v162 = vsel %vm97, %v54, 0
    %v165 = vsel %vm97, %v55, 0
    %v168 = vsel %vm97, %v56, 0
    %v171 = vsel %vm97, %v57, 0
    %v174 = vsel %vm97, %v58, 0
    %v177 = vsel %vm97, %v59, 0
    %v180 = vsel %vm97, %v60, 0
    %v183 = vsel %vm97, %v61, 0
    %v186 = vsel %vm97, %v62, 0
    %v189 = vsel %vm97, %v63, 0
    %v192 = vsel %vm97, %v64, 0
    %v195 = vsel %vm97, %v65, 0
    %v198 = vsel %vm97, %v66, 0
    %v201 = vsel %vm97, %v67, 0
    %v204 = vsel %vm97, %v68, 0
    %v207 = vsel %vm97, %v69, 0
    %v210 = vsel %vm97, %v70, 0
    %v213 = vsel %vm97, %v71, 0
    %v216 = vsel %vm97, %v72, 0
    %v219 = vsel %vm97, %v73, 0
    %v222 = vsel %vm97, %v74, 0
    %v225 = vsel %vm97, %v75, 0
    %v228 = vsel %vm97, %v76, 0
    %v231 = vsel %vm97, %v77, 0
    %v234 = vsel %vm97, %v78, 0
    %v237 = vsel %vm97, %v79, 0
    %v240 = vsel %vm97, %v80, 0
    %v243 = vsel %vm97, %v81, 0
    %v246 = vsel %vm97, %v82, 0
    %248 = vmatprep.subr.mxu0 0.0
    %249 = vmatpush1.xpose.msra.mxu0 %v150
    %250 = vmatprep.subr.mxu0 0.0
    %251 = vmatpush1.xpose.msra.mxu0 %v147
    %252 = vmatprep.subr.mxu0 0.0
    %253 = vmatpush1.xpose.msra.mxu0 %v144
    %254 = vmatprep.subr.mxu0 0.0
    %255 = vmatpush1.xpose.msra.mxu0 %v141
    %256 = vmatprep.subr.mxu0 0.0
    %257 = vmatpush1.xpose.msra.mxu0 %v138
    %258 = vmatprep.subr.mxu0 0.0
    %259 = vmatpush1.xpose.msra.mxu0 %v135
    %260 = vmatprep.subr.mxu0 0.0
    %261 = vmatpush1.xpose.msra.mxu0 %v132
    %262 = vmatprep.subr.mxu0 0.0
    %263 = vmatpush1.xpose.msra.mxu0 %v129
    %264 = vmatprep.subr.mxu0 0.0
    %265 = vmatpush1.xpose.msra.mxu0 %v126
    %266 = vmatprep.subr.mxu0 0.0
    %267 = vmatpush1.xpose.msra.mxu0 %v123
    %268 = vmatprep.subr.mxu0 0.0
    %269 = vmatpush1.xpose.msra.mxu0 %v120
    %270 = vmatprep.subr.mxu0 0.0
    %271 = vmatpush1.xpose.msra.mxu0 %v117
    %272 = vmatprep.subr.mxu0 0.0
    %273 = vmatpush1.xpose.msra.mxu0 %v114
    %274 = vmatprep.subr.mxu0 0.0
    %275 = vmatpush1.xpose.msra.mxu0 %v111
    %276 = vmatprep.subr.mxu0 0.0
    %277 = vmatpush1.xpose.msra.mxu0 %v108
    %278 = vmatprep.subr.mxu0 0.0
    %279 = vmatpush1.xpose.msra.mxu0 %v105
    %280 = vmatprep.subr.mxu0 0.0
    %281 = vmatpush2.xpose.msra.mxu0 %v198
    %282 = vmatprep.subr.mxu0 0.0
    %283 = vmatpush2.xpose.msra.mxu0 %v195
    %284 = vmatprep.subr.mxu0 0.0
    %285 = vmatpush2.xpose.msra.mxu0 %v192
    %286 = vmatprep.subr.mxu0 0.0
    %287 = vmatpush2.xpose.msra.mxu0 %v189
    %288 = vmatprep.subr.mxu0 0.0
    %289 = vmatpush2.xpose.msra.mxu0 %v186
    %290 = vmatprep.subr.mxu0 0.0
    %291 = vmatpush2.xpose.msra.mxu0 %v183
    %292 = vmatprep.subr.mxu0 0.0
    %293 = vmatpush2.xpose.msra.mxu0 %v180
    %294 = vmatprep.subr.mxu0 0.0
    %295 = vmatpush2.xpose.msra.mxu0 %v177
    %296 = vmatprep.subr.mxu0 0.0
    %297 = vmatpush2.xpose.msra.mxu0 %v174
    %298 = vmatprep.subr.mxu0 0.0
    %299 = vmatpush2.xpose.msra.mxu0 %v171
    %300 = vmatprep.subr.mxu0 0.0
    %301 = vmatpush2.xpose.msra.mxu0 %v168
    %302 = vmatprep.subr.mxu0 0.0
    %303 = vmatpush2.xpose.msra.mxu0 %v165
    %304 = vmatprep.subr.mxu0 0.0
    %305 = vmatpush2.xpose.msra.mxu0 %v162
    %306 = vmatprep.subr.mxu0 0.0
    %307 = vmatpush2.xpose.msra.mxu0 %v159
    %308 = vmatprep.subr.mxu0 0.0
    %309 = vmatpush2.xpose.msra.mxu0 %v156
    %310 = vmatprep.subr.mxu0 0.0
    %311 = vmatpush2.xpose.msra.mxu0 %v153
    %312 = vmatprep.mubr.f32.mxu0 0.0
    %313 = vmatmul.mubr.f32.gmra.mxu0 %v99
    %v314 = vpop.f32.mrf.mxu0
    %v315 = vadd.f32 %v90, %v314
    %v316 = vpop.f32.mrf.mxu0
    %v317 = vadd.f32 %v90, %v316
    %318 = vmatprep.mubr.f32.mxu0 0.0
    %319 = vmatmul.mubr.f32.gmra.mxu0 %v102
    %v320 = vpop.f32.mrf.mxu0
    %v321 = vadd.f32 %v95, %v320
    %v322 = vpop.f32.mrf.mxu0
    %v323 = vadd.f32 %v95, %v322
    %324 = vdwg.mxu0
    %325 = vmatprep.subr.mxu0 0.0
    %326 = vmatpush1.xpose.msra.mxu0 %v246
    %327 = vmatprep.subr.mxu0 0.0
    %328 = vmatpush1.xpose.msra.mxu0 %v243
    %329 = vmatprep.subr.mxu0 0.0
    %330 = vmatpush1.xpose.msra.mxu0 %v240
    %331 = vmatprep.subr.mxu0 0.0
    %332 = vmatpush1.xpose.msra.mxu0 %v237
    %333 = vmatprep.subr.mxu0 0.0
    %334 = vmatpush1.xpose.msra.mxu0 %v234
    %335 = vmatprep.subr.mxu0 0.0
    %336 = vmatpush1.xpose.msra.mxu0 %v231
    %337 = vmatprep.subr.mxu0 0.0
    %338 = vmatpush1.xpose.msra.mxu0 %v228
    %339 = vmatprep.subr.mxu0 0.0
    %340 = vmatpush1.xpose.msra.mxu0 %v225
    %341 = vmatprep.subr.mxu0 0.0
    %342 = vmatpush1.xpose.msra.mxu0 %v222
    %343 = vmatprep.subr.mxu0 0.0
    %344 = vmatpush1.xpose.msra.mxu0 %v219
    %345 = vmatprep.subr.mxu0 0.0
    %346 = vmatpush1.xpose.msra.mxu0 %v216
    %347 = vmatprep.subr.mxu0 0.0
    %348 = vmatpush1.xpose.msra.mxu0 %v213
    %349 = vmatprep.subr.mxu0 0.0
    %350 = vmatpush1.xpose.msra.mxu0 %v210
    %351 = vmatprep.subr.mxu0 0.0
    %352 = vmatpush1.xpose.msra.mxu0 %v207
    %353 = vmatprep.subr.mxu0 0.0
    %354 = vmatpush1.xpose.msra.mxu0 %v204
    %355 = vmatprep.subr.mxu0 0.0
    %356 = vmatpush1.xpose.msra.mxu0 %v201
    %357 = vmatprep.subr.mxu0 0.0
    %358 = vmatpush2.xpose.msra.mxu0 0.0
    %359 = vmatprep.subr.mxu0 0.0
    %360 = vmatpush2.xpose.msra.mxu0 0.0
    %361 = vmatprep.subr.mxu0 0.0
    %362 = vmatpush2.xpose.msra.mxu0 0.0
    %363 = vmatprep.subr.mxu0 0.0
    %364 = vmatpush2.xpose.msra.mxu0 0.0
    %365 = vmatprep.subr.mxu0 0.0
    %366 = vmatpush2.xpose.msra.mxu0 0.0
    %367 = vmatprep.subr.mxu0 0.0
    %368 = vmatpush2.xpose.msra.mxu0 0.0
    %369 = vmatprep.subr.mxu0 0.0
    %370 = vmatpush2.xpose.msra.mxu0 0.0
    %371 = vmatprep.subr.mxu0 0.0
    %372 = vmatpush2.xpose.msra.mxu0 0.0
    %373 = vmatprep.subr.mxu0 0.0
    %374 = vmatpush2.xpose.msra.mxu0 0.0
    %375 = vmatprep.subr.mxu0 0.0
    %376 = vmatpush2.xpose.msra.mxu0 0.0
    %377 = vmatprep.subr.mxu0 0.0
    %378 = vmatpush2.xpose.msra.mxu0 0.0
    %379 = vmatprep.subr.mxu0 0.0
    %380 = vmatpush2.xpose.msra.mxu0 0.0
    %381 = vmatprep.subr.mxu0 0.0
    %382 = vmatpush2.xpose.msra.mxu0 0.0
    %383 = vmatprep.subr.mxu0 0.0
    %384 = vmatpush2.xpose.msra.mxu0 0.0
    %385 = vmatprep.subr.mxu0 0.0
    %386 = vmatpush2.xpose.msra.mxu0 0.0
    %387 = vmatprep.subr.mxu0 0.0
    %388 = vmatpush2.xpose.msra.mxu0 0.0
    %389 = vmatprep.mubr.f32.mxu0 0.0
    %390 = vmatmul.mubr.f32.gmra.mxu0 %v99
    %v391 = vpop.f32.mrf.mxu0
    %v392 = vadd.f32 %v90, %v391
    %v393 = vpop.f32.mrf.mxu0
    %394 = vmatprep.mubr.f32.mxu0 0.0
    %395 = vmatmul.mubr.f32.gmra.mxu0 %v102
    %v396 = vpop.f32.mrf.mxu0
    %v397 = vadd.f32 %v95, %v396
    %v398 = vpop.f32.mrf.mxu0
    %399 = vdwg.mxu0
    %v400 = vmul.f32 %v315, 0.5
    %v401 = vmul.f32 %v317, 0.5
    %v402 = vmul.f32 %v392, 0.5
    %v403 = vmul.f32 %v321, 0.5
    %v404 = vmul.f32 %v323, 0.5
    %v405 = vmul.f32 %v397, 0.5
    %v406 = vtanh.pop %v400
    %v407 = vtanh.pop %v401
    %v408 = vtanh.pop %v402
    %v409 = vtanh.pop %v403
    %v410 = vtanh.pop %v404
    %v411 = vtanh.pop %v405
    %v412 = vadd.f32 %v406, 1.0
    %v413 = vadd.f32 %v407, 1.0
    %v414 = vadd.f32 %v408, 1.0
    %v415 = vadd.f32 %v409, 1.0
    %v416 = vadd.f32 %v410, 1.0
    %v417 = vadd.f32 %v411, 1.0
    %v418 = vmul.f32 %v412, 0.5
    %v419 = vmul.f32 %v413, 0.5
    %v420 = vmul.f32 %v414, 0.5
    %v421 = vmul.f32 %v415, 0.5
    %v422 = vmul.f32 %v416, 0.5
    %v423 = vmul.f32 %v417, 0.5
    %v424 = vld [vmem:[%s3] sm:$0xff]
    %v425 = vld [vmem:[%s3 + $0x8] sm:$0x7f]
    %v426 = vld [vmem:[%s4] sm:$0xff]
    %v427 = vld [vmem:[%s4 + $0x8] sm:$0x7f]
    %429 = vset.pattern.permute.xlu0 0
    %430 = vperm.xlu0 %429, %v426
    %v431 = vpop.permute.xlu0 %430
    %434 = vset.pattern.permute.xlu0 0
    %435 = vperm.xlu0 %434, %v427
    %v436 = vpop.permute.xlu0 %435
    %vm438 = vcmask 121856
    %v440 = vsel %vm438, %v424, 0
    %v443 = vsel %vm438, %v425, 0
    %vm445 = vcmask 1046528
    %v447 = vsel %vm445, %v421, 0
    %v450 = vsel %vm445, %v422, 0
    %v453 = vsel %vm445, %v423, 0
    %455 = vmatprep.subr.mxu0 0.0
    %456 = vmatpush1.msra.mxu0 0.0
    %457 = vmatprep.subr.mxu0 0.0
    %458 = vmatpush1.msra.mxu0 0.0
    %459 = vmatprep.subr.mxu0 0.0
    %460 = vmatpush1.msra.mxu0 0.0
    %461 = vmatprep.subr.mxu0 0.0
    %462 = vmatpush1.msra.mxu0 0.0
    %463 = vmatprep.subr.mxu0 0.0
    %464 = vmatpush1.msra.mxu0 0.0
    %465 = vmatprep.subr.mxu0 0.0
    %466 = vmatpush1.msra.mxu0 0.0
    %467 = vmatprep.subr.mxu0 0.0
    %468 = vmatpush1.msra.mxu0 0.0
    %469 = vmatprep.subr.mxu0 0.0
    %470 = vmatpush1.msra.mxu0 0.0
    %471 = vmatprep.subr.mxu0 0.0
    %472 = vmatpush1.msra.mxu0 0.0
    %473 = vmatprep.subr.mxu0 0.0
    %474 = vmatpush1.msra.mxu0 0.0
    %475 = vmatprep.subr.mxu0 0.0
    %476 = vmatpush1.msra.mxu0 0.0
    %477 = vmatprep.subr.mxu0 0.0
    %478 = vmatpush1.msra.mxu0 0.0
    %479 = vmatprep.subr.mxu0 0.0
    %480 = vmatpush1.msra.mxu0 0.0
    %481 = vmatprep.subr.mxu0 0.0
    %482 = vmatpush1.msra.mxu0 0.0
    %483 = vmatprep.subr.mxu0 %v450
    %484 = vmatpush1.msra.mxu0 %v447
    %485 = vmatprep.subr.mxu0 %v419
    %486 = vmatpush1.msra.mxu0 %v418
    %487 = vmatprep.subr.mxu0 0.0
    %488 = vmatpush2.msra.mxu0 0.0
    %489 = vmatprep.subr.mxu0 0.0
    %490 = vmatpush2.msra.mxu0 0.0
    %491 = vmatprep.subr.mxu0 0.0
    %492 = vmatpush2.msra.mxu0 0.0
    %493 = vmatprep.subr.mxu0 0.0
    %494 = vmatpush2.msra.mxu0 0.0
    %495 = vmatprep.subr.mxu0 0.0
    %496 = vmatpush2.msra.mxu0 0.0
    %497 = vmatprep.subr.mxu0 0.0
    %498 = vmatpush2.msra.mxu0 0.0
    %499 = vmatprep.subr.mxu0 0.0
    %500 = vmatpush2.msra.mxu0 0.0
    %501 = vmatprep.subr.mxu0 0.0
    %502 = vmatpush2.msra.mxu0 0.0
    %503 = vmatprep.subr.mxu0 0.0
    %504 = vmatpush2.msra.mxu0 0.0
    %505 = vmatprep.subr.mxu0 0.0
    %506 = vmatpush2.msra.mxu0 0.0
    %507 = vmatprep.subr.mxu0 0.0
    %508 = vmatpush2.msra.mxu0 0.0
    %509 = vmatprep.subr.mxu0 0.0
    %510 = vmatpush2.msra.mxu0 0.0
    %511 = vmatprep.subr.mxu0 0.0
    %512 = vmatpush2.msra.mxu0 0.0
    %513 = vmatprep.subr.mxu0 0.0
    %514 = vmatpush2.msra.mxu0 0.0
    %515 = vmatprep.subr.mxu0 0.0
    %516 = vmatpush2.msra.mxu0 0.0
    %517 = vmatprep.subr.mxu0 0.0
    %518 = vmatpush2.msra.mxu0 0.0
    %519 = vmatprep.mubr.f32.mxu0 0.0
    %520 = vmatmul.mubr.f32.gmra.mxu0 %v440
    %v521 = vpop.f32.mrf.mxu0
    %v522 = vadd.f32 %v431, %v521
    %v523 = vpop.f32.mrf.mxu0
    %v524 = vadd.f32 %v431, %v523
    %525 = vmatprep.mubr.f32.mxu0 0.0
    %526 = vmatmul.mubr.f32.gmra.mxu0 %v443
    %v527 = vpop.f32.mrf.mxu0
    %v528 = vadd.f32 %v436, %v527
    %v529 = vpop.f32.mrf.mxu0
    %v530 = vadd.f32 %v436, %v529
    %531 = vdwg.mxu0
    %532 = vmatprep.subr.mxu0 0.0
    %533 = vmatpush1.msra.mxu0 0.0
    %534 = vmatprep.subr.mxu0 0.0
    %535 = vmatpush1.msra.mxu0 0.0
    %536 = vmatprep.subr.mxu0 0.0
    %537 = vmatpush1.msra.mxu0 0.0
    %538 = vmatprep.subr.mxu0 0.0
    %539 = vmatpush1.msra.mxu0 0.0
    %540 = vmatprep.subr.mxu0 0.0
    %541 = vmatpush1.msra.mxu0 0.0
    %542 = vmatprep.subr.mxu0 0.0
    %543 = vmatpush1.msra.mxu0 0.0
    %544 = vmatprep.subr.mxu0 0.0
    %545 = vmatpush1.msra.mxu0 0.0
    %546 = vmatprep.subr.mxu0 0.0
    %547 = vmatpush1.msra.mxu0 0.0
    %548 = vmatprep.subr.mxu0 0.0
    %549 = vmatpush1.msra.mxu0 0.0
    %550 = vmatprep.subr.mxu0 0.0
    %551 = vmatpush1.msra.mxu0 0.0
    %552 = vmatprep.subr.mxu0 0.0
    %553 = vmatpush1.msra.mxu0 0.0
    %554 = vmatprep.subr.mxu0 0.0
    %555 = vmatpush1.msra.mxu0 0.0
    %556 = vmatprep.subr.mxu0 0.0
    %557 = vmatpush1.msra.mxu0 0.0
    %558 = vmatprep.subr.mxu0 0.0
    %559 = vmatpush1.msra.mxu0 0.0
    %560 = vmatprep.subr.mxu0 0.0
    %561 = vmatpush1.msra.mxu0 %v453
    %562 = vmatprep.subr.mxu0 0.0
    %563 = vmatpush1.msra.mxu0 %v420
    %564 = vmatprep.subr.mxu0 0.0
    %565 = vmatpush2.msra.mxu0 0.0
    %566 = vmatprep.subr.mxu0 0.0
    %567 = vmatpush2.msra.mxu0 0.0
    %568 = vmatprep.subr.mxu0 0.0
    %569 = vmatpush2.msra.mxu0 0.0
    %570 = vmatprep.subr.mxu0 0.0
    %571 = vmatpush2.msra.mxu0 0.0
    %572 = vmatprep.subr.mxu0 0.0
    %573 = vmatpush2.msra.mxu0 0.0
    %574 = vmatprep.subr.mxu0 0.0
    %575 = vmatpush2.msra.mxu0 0.0
    %576 = vmatprep.subr.mxu0 0.0
    %577 = vmatpush2.msra.mxu0 0.0
    %578 = vmatprep.subr.mxu0 0.0
    %579 = vmatpush2.msra.mxu0 0.0
    %580 = vmatprep.subr.mxu0 0.0
    %581 = vmatpush2.msra.mxu0 0.0
    %582 = vmatprep.subr.mxu0 0.0
    %583 = vmatpush2.msra.mxu0 0.0
    %584 = vmatprep.subr.mxu0 0.0
    %585 = vmatpush2.msra.mxu0 0.0
    %586 = vmatprep.subr.mxu0 0.0
    %587 = vmatpush2.msra.mxu0 0.0
    %588 = vmatprep.subr.mxu0 0.0
    %589 = vmatpush2.msra.mxu0 0.0
    %590 = vmatprep.subr.mxu0 0.0
    %591 = vmatpush2.msra.mxu0 0.0
    %592 = vmatprep.subr.mxu0 0.0
    %593 = vmatpush2.msra.mxu0 0.0
    %594 = vmatprep.subr.mxu0 0.0
    %595 = vmatpush2.msra.mxu0 0.0
    %596 = vmatprep.mubr.f32.mxu0 0.0
    %597 = vmatmul.mubr.f32.gmra.mxu0 %v440
    %v598 = vpop.f32.mrf.mxu0
    %v599 = vadd.f32 %v431, %v598
    %v600 = vpop.f32.mrf.mxu0
    %601 = vmatprep.mubr.f32.mxu0 0.0
    %602 = vmatmul.mubr.f32.gmra.mxu0 %v443
    %v603 = vpop.f32.mrf.mxu0
    %v604 = vadd.f32 %v436, %v603
    %v605 = vpop.f32.mrf.mxu0
    %606 = vdwg.mxu0
    %v607 = vmul.f32 %v522, 0.5
    %v608 = vmul.f32 %v524, 0.5
    %v609 = vmul.f32 %v599, 0.5
    %v610 = vmul.f32 %v528, 0.5
    %v611 = vmul.f32 %v530, 0.5
    %v612 = vmul.f32 %v604, 0.5
    %v613 = vtanh.pop %v607
    %v614 = vtanh.pop %v608
    %v615 = vtanh.pop %v609
    %v616 = vtanh.pop %v610
    %v617 = vtanh.pop %v611
    %v618 = vtanh.pop %v612
    %v619 = vadd.f32 %v613, 1.0
    %v620 = vadd.f32 %v614, 1.0
    %v621 = vadd.f32 %v615, 1.0
    %v622 = vadd.f32 %v616, 1.0
    %v623 = vadd.f32 %v617, 1.0
    %v624 = vadd.f32 %v618, 1.0
    %v625 = vmul.f32 %v619, 0.5
    %v626 = vmul.f32 %v620, 0.5
    %v627 = vmul.f32 %v621, 0.5
    %v628 = vmul.f32 %v622, 0.5
    %v629 = vmul.f32 %v623, 0.5
    %v630 = vmul.f32 %v624, 0.5
    %v631 = vld [vmem:[%s5] sm:$0xff]
    %v632 = vld [vmem:[%s5 + $0x8] sm:$0x7f]
    %v633 = vld [vmem:[%s6] sm:$0xff]
    %v634 = vld [vmem:[%s6 + $0x8] sm:$0x7f]
    %636 = vset.pattern.permute.xlu0 0
    %637 = vperm.xlu0 %636, %v633
    %v638 = vpop.permute.xlu0 %637
    %641 = vset.pattern.permute.xlu0 0
    %642 = vperm.xlu0 %641, %v634
    %v643 = vpop.permute.xlu0 %642
    %v646 = vsel %vm438, %v631, 0
    %v649 = vsel %vm438, %v632, 0
    %v652 = vsel %vm445, %v628, 0
    %v655 = vsel %vm445, %v629, 0
    %v658 = vsel %vm445, %v630, 0
    %660 = vmatprep.subr.mxu0 0.0
    %661 = vmatpush1.msra.mxu0 0.0
    %662 = vmatprep.subr.mxu0 0.0
    %663 = vmatpush1.msra.mxu0 0.0
    %664 = vmatprep.subr.mxu0 0.0
    %665 = vmatpush1.msra.mxu0 0.0
    %666 = vmatprep.subr.mxu0 0.0
    %667 = vmatpush1.msra.mxu0 0.0
    %668 = vmatprep.subr.mxu0 0.0
    %669 = vmatpush1.msra.mxu0 0.0
    %670 = vmatprep.subr.mxu0 0.0
    %671 = vmatpush1.msra.mxu0 0.0
    %672 = vmatprep.subr.mxu0 0.0
    %673 = vmatpush1.msra.mxu0 0.0
    %674 = vmatprep.subr.mxu0 0.0
    %675 = vmatpush1.msra.mxu0 0.0
    %676 = vmatprep.subr.mxu0 0.0
    %677 = vmatpush1.msra.mxu0 0.0
    %678 = vmatprep.subr.mxu0 0.0
    %679 = vmatpush1.msra.mxu0 0.0
    %680 = vmatprep.subr.mxu0 0.0
    %681 = vmatpush1.msra.mxu0 0.0
    %682 = vmatprep.subr.mxu0 0.0
    %683 = vmatpush1.msra.mxu0 0.0
    %684 = vmatprep.subr.mxu0 0.0
    %685 = vmatpush1.msra.mxu0 0.0
    %686 = vmatprep.subr.mxu0 0.0
    %687 = vmatpush1.msra.mxu0 0.0
    %688 = vmatprep.subr.mxu0 %v655
    %689 = vmatpush1.msra.mxu0 %v652
    %690 = vmatprep.subr.mxu0 %v626
    %691 = vmatpush1.msra.mxu0 %v625
    %692 = vmatprep.subr.mxu0 0.0
    %693 = vmatpush2.msra.mxu0 0.0
    %694 = vmatprep.subr.mxu0 0.0
    %695 = vmatpush2.msra.mxu0 0.0
    %696 = vmatprep.subr.mxu0 0.0
    %697 = vmatpush2.msra.mxu0 0.0
    %698 = vmatprep.subr.mxu0 0.0
    %699 = vmatpush2.msra.mxu0 0.0
    %700 = vmatprep.subr.mxu0 0.0
    %701 = vmatpush2.msra.mxu0 0.0
    %702 = vmatprep.subr.mxu0 0.0
    %703 = vmatpush2.msra.mxu0 0.0
    %704 = vmatprep.subr.mxu0 0.0
    %705 = vmatpush2.msra.mxu0 0.0
    %706 = vmatprep.subr.mxu0 0.0
    %707 = vmatpush2.msra.mxu0 0.0
    %708 = vmatprep.subr.mxu0 0.0
    %709 = vmatpush2.msra.mxu0 0.0
    %710 = vmatprep.subr.mxu0 0.0
    %711 = vmatpush2.msra.mxu0 0.0
    %712 = vmatprep.subr.mxu0 0.0
    %713 = vmatpush2.msra.mxu0 0.0
    %714 = vmatprep.subr.mxu0 0.0
    %715 = vmatpush2.msra.mxu0 0.0
    %716 = vmatprep.subr.mxu0 0.0
    %717 = vmatpush2.msra.mxu0 0.0
    %718 = vmatprep.subr.mxu0 0.0
    %719 = vmatpush2.msra.mxu0 0.0
    %720 = vmatprep.subr.mxu0 0.0
    %721 = vmatpush2.msra.mxu0 0.0
    %722 = vmatprep.subr.mxu0 0.0
    %723 = vmatpush2.msra.mxu0 0.0
    %724 = vmatprep.mubr.f32.mxu0 0.0
    %725 = vmatmul.mubr.f32.gmra.mxu0 %v646
    %v726 = vpop.f32.mrf.mxu0
    %v727 = vadd.f32 %v638, %v726
    %v728 = vpop.f32.mrf.mxu0
    %v729 = vadd.f32 %v638, %v728
    %730 = vmatprep.mubr.f32.mxu0 0.0
    %731 = vmatmul.mubr.f32.gmra.mxu0 %v649
    %v732 = vpop.f32.mrf.mxu0
    %v733 = vadd.f32 %v643, %v732
    %v734 = vpop.f32.mrf.mxu0
    %v735 = vadd.f32 %v643, %v734
    %736 = vdwg.mxu0
    %737 = vmatprep.subr.mxu0 0.0
    %738 = vmatpush1.msra.mxu0 0.0
    %739 = vmatprep.subr.mxu0 0.0
    %740 = vmatpush1.msra.mxu0 0.0
    %741 = vmatprep.subr.mxu0 0.0
    %742 = vmatpush1.msra.mxu0 0.0
    %743 = vmatprep.subr.mxu0 0.0
    %744 = vmatpush1.msra.mxu0 0.0
    %745 = vmatprep.subr.mxu0 0.0
    %746 = vmatpush1.msra.mxu0 0.0
    %747 = vmatprep.subr.mxu0 0.0
    %748 = vmatpush1.msra.mxu0 0.0
    %749 = vmatprep.subr.mxu0 0.0
    %750 = vmatpush1.msra.mxu0 0.0
    %751 = vmatprep.subr.mxu0 0.0
    %752 = vmatpush1.msra.mxu0 0.0
    %753 = vmatprep.subr.mxu0 0.0
    %754 = vmatpush1.msra.mxu0 0.0
    %755 = vmatprep.subr.mxu0 0.0
    %756 = vmatpush1.msra.mxu0 0.0
    %757 = vmatprep.subr.mxu0 0.0
    %758 = vmatpush1.msra.mxu0 0.0
    %759 = vmatprep.subr.mxu0 0.0
    %760 = vmatpush1.msra.mxu0 0.0
    %761 = vmatprep.subr.mxu0 0.0
    %762 = vmatpush1.msra.mxu0 0.0
    %763 = vmatprep.subr.mxu0 0.0
    %764 = vmatpush1.msra.mxu0 0.0
    %765 = vmatprep.subr.mxu0 0.0
    %766 = vmatpush1.msra.mxu0 %v658
    %767 = vmatprep.subr.mxu0 0.0
    %768 = vmatpush1.msra.mxu0 %v627
    %769 = vmatprep.subr.mxu0 0.0
    %770 = vmatpush2.msra.mxu0 0.0
    %771 = vmatprep.subr.mxu0 0.0
    %772 = vmatpush2.msra.mxu0 0.0
    %773 = vmatprep.subr.mxu0 0.0
    %774 = vmatpush2.msra.mxu0 0.0
    %775 = vmatprep.subr.mxu0 0.0
    %776 = vmatpush2.msra.mxu0 0.0
    %777 = vmatprep.subr.mxu0 0.0
    %778 = vmatpush2.msra.mxu0 0.0
    %779 = vmatprep.subr.mxu0 0.0
    %780 = vmatpush2.msra.mxu0 0.0
    %781 = vmatprep.subr.mxu0 0.0
    %782 = vmatpush2.msra.mxu0 0.0
    %783 = vmatprep.subr.mxu0 0.0
    %784 = vmatpush2.msra.mxu0 0.0
    %785 = vmatprep.subr.mxu0 0.0
    %786 = vmatpush2.msra.mxu0 0.0
    %787 = vmatprep.subr.mxu0 0.0
    %788 = vmatpush2.msra.mxu0 0.0
    %789 = vmatprep.subr.mxu0 0.0
    %790 = vmatpush2.msra.mxu0 0.0
    %791 = vmatprep.subr.mxu0 0.0
    %792 = vmatpush2.msra.mxu0 0.0
    %793 = vmatprep.subr.mxu0 0.0
    %794 = vmatpush2.msra.mxu0 0.0
    %795 = vmatprep.subr.mxu0 0.0
    %796 = vmatpush2.msra.mxu0 0.0
    %797 = vmatprep.subr.mxu0 0.0
    %798 = vmatpush2.msra.mxu0 0.0
    %799 = vmatprep.subr.mxu0 0.0
    %800 = vmatpush2.msra.mxu0 0.0
    %801 = vmatprep.mubr.f32.mxu0 0.0
    %802 = vmatmul.mubr.f32.gmra.mxu0 %v646
    %v803 = vpop.f32.mrf.mxu0
    %v804 = vadd.f32 %v638, %v803
    %v805 = vpop.f32.mrf.mxu0
    %806 = vmatprep.mubr.f32.mxu0 0.0
    %807 = vmatmul.mubr.f32.gmra.mxu0 %v649
    %v808 = vpop.f32.mrf.mxu0
    %v809 = vadd.f32 %v643, %v808
    %v810 = vpop.f32.mrf.mxu0
    %811 = vdwg.mxu0
    %v812 = vmul.f32 %v727, 0.5
    %v813 = vmul.f32 %v729, 0.5
    %v814 = vmul.f32 %v804, 0.5
    %v815 = vmul.f32 %v733, 0.5
    %v816 = vmul.f32 %v735, 0.5
    %v817 = vmul.f32 %v809, 0.5
    %v818 = vtanh.pop %v812
    %v819 = vtanh.pop %v813
    %v820 = vtanh.pop %v814
    %v821 = vtanh.pop %v815
    %v822 = vtanh.pop %v816
    %v823 = vtanh.pop %v817
    %v824 = vadd.f32 %v818, 1.0
    %v825 = vadd.f32 %v819, 1.0
    %v826 = vadd.f32 %v820, 1.0
    %v827 = vadd.f32 %v821, 1.0
    %v828 = vadd.f32 %v822, 1.0
    %v829 = vadd.f32 %v823, 1.0
    %v830 = vmul.f32 %v824, 0.5
    %v831 = vmul.f32 %v825, 0.5
    %v832 = vmul.f32 %v826, 0.5
    %v833 = vmul.f32 %v827, 0.5
    %v834 = vmul.f32 %v828, 0.5
    %v835 = vmul.f32 %v829, 0.5
    %v836 = vld [vmem:[%s7] sm:$0x1]
    %v837 = vld [vmem:[#allocation2] sm:$0x1]
    %839 = vset.pattern.permute.xlu0 0
    %840 = vperm.xlu0 %839, %v837
    %v841 = vpop.permute.xlu0 %840
    %v843 = vlaneseq
    %v844 = vshrl.u32 %v843, 7
    %v845 = vsub.s32 0, %v844
    %v846 = vrot.slane %v841, %v845
    %v848 = vsel %vm438, %v836, 0
    %v851 = vsel %vm445, %v833, 0
    %v854 = vsel %vm445, %v834, 0
    %v857 = vsel %vm445, %v835, 0
    %859 = vmatprep.subr.mxu0 0.0
    %860 = vmatpush1.msra.mxu0 0.0
    %861 = vmatprep.subr.mxu0 0.0
    %862 = vmatpush1.msra.mxu0 0.0
    %863 = vmatprep.subr.mxu0 0.0
    %864 = vmatpush1.msra.mxu0 0.0
    %865 = vmatprep.subr.mxu0 0.0
    %866 = vmatpush1.msra.mxu0 0.0
    %867 = vmatprep.subr.mxu0 0.0
    %868 = vmatpush1.msra.mxu0 0.0
    %869 = vmatprep.subr.mxu0 0.0
    %870 = vmatpush1.msra.mxu0 0.0
    %871 = vmatprep.subr.mxu0 0.0
    %872 = vmatpush1.msra.mxu0 0.0
    %873 = vmatprep.subr.mxu0 0.0
    %874 = vmatpush1.msra.mxu0 0.0
    %875 = vmatprep.subr.mxu0 0.0
    %876 = vmatpush1.msra.mxu0 0.0
    %877 = vmatprep.subr.mxu0 0.0
    %878 = vmatpush1.msra.mxu0 0.0
    %879 = vmatprep.subr.mxu0 0.0
    %880 = vmatpush1.msra.mxu0 0.0
    %881 = vmatprep.subr.mxu0 0.0
    %882 = vmatpush1.msra.mxu0 0.0
    %883 = vmatprep.subr.mxu0 0.0
    %884 = vmatpush1.msra.mxu0 0.0
    %885 = vmatprep.subr.mxu0 0.0
    %886 = vmatpush1.msra.mxu0 0.0
    %887 = vmatprep.subr.mxu0 %v854
    %888 = vmatpush1.msra.mxu0 %v851
    %889 = vmatprep.subr.mxu0 %v831
    %890 = vmatpush1.msra.mxu0 %v830
    %891 = vmatprep.subr.mxu0 0.0
    %892 = vmatpush2.msra.mxu0 0.0
    %893 = vmatprep.subr.mxu0 0.0
    %894 = vmatpush2.msra.mxu0 0.0
    %895 = vmatprep.subr.mxu0 0.0
    %896 = vmatpush2.msra.mxu0 0.0
    %897 = vmatprep.subr.mxu0 0.0
    %898 = vmatpush2.msra.mxu0 0.0
    %899 = vmatprep.subr.mxu0 0.0
    %900 = vmatpush2.msra.mxu0 0.0
    %901 = vmatprep.subr.mxu0 0.0
    %902 = vmatpush2.msra.mxu0 0.0
    %903 = vmatprep.subr.mxu0 0.0
    %904 = vmatpush2.msra.mxu0 0.0
    %905 = vmatprep.subr.mxu0 0.0
    %906 = vmatpush2.msra.mxu0 0.0
    %907 = vmatprep.subr.mxu0 0.0
    %908 = vmatpush2.msra.mxu0 0.0
    %909 = vmatprep.subr.mxu0 0.0
    %910 = vmatpush2.msra.mxu0 0.0
    %911 = vmatprep.subr.mxu0 0.0
    %912 = vmatpush2.msra.mxu0 0.0
    %913 = vmatprep.subr.mxu0 0.0
    %914 = vmatpush2.msra.mxu0 0.0
    %915 = vmatprep.subr.mxu0 0.0
    %916 = vmatpush2.msra.mxu0 0.0
    %917 = vmatprep.subr.mxu0 0.0
    %918 = vmatpush2.msra.mxu0 0.0
    %919 = vmatprep.subr.mxu0 0.0
    %920 = vmatpush2.msra.mxu0 0.0
    %921 = vmatprep.subr.mxu0 0.0
    %922 = vmatpush2.msra.mxu0 0.0
    %923 = vmatprep.mubr.f32.mxu0 0.0
    %924 = vmatmul.mubr.f32.gmra.mxu0 %v848
    %v925 = vpop.f32.mrf.mxu0
    %v926 = vadd.f32 %v846, %v925
    %v927 = vpop.f32.mrf.mxu0
    %v928 = vadd.f32 %v846, %v927
    %929 = vdwg.mxu0
    %930 = vmatprep.subr.mxu0 0.0
    %931 = vmatpush1.msra.mxu0 0.0
    %932 = vmatprep.subr.mxu0 0.0
    %933 = vmatpush1.msra.mxu0 0.0
    %934 = vmatprep.subr.mxu0 0.0
    %935 = vmatpush1.msra.mxu0 0.0
    %936 = vmatprep.subr.mxu0 0.0
    %937 = vmatpush1.msra.mxu0 0.0
    %938 = vmatprep.subr.mxu0 0.0
    %939 = vmatpush1.msra.mxu0 0.0
    %940 = vmatprep.subr.mxu0 0.0
    %941 = vmatpush1.msra.mxu0 0.0
    %942 = vmatprep.subr.mxu0 0.0
    %943 = vmatpush1.msra.mxu0 0.0
    %944 = vmatprep.subr.mxu0 0.0
    %945 = vmatpush1.msra.mxu0 0.0
    %946 = vmatprep.subr.mxu0 0.0
    %947 = vmatpush1.msra.mxu0 0.0
    %948 = vmatprep.subr.mxu0 0.0
    %949 = vmatpush1.msra.mxu0 0.0
    %950 = vmatprep.subr.mxu0 0.0
    %951 = vmatpush1.msra.mxu0 0.0
    %952 = vmatprep.subr.mxu0 0.0
    %953 = vmatpush1.msra.mxu0 0.0
    %954 = vmatprep.subr.mxu0 0.0
    %955 = vmatpush1.msra.mxu0 0.0
    %956 = vmatprep.subr.mxu0 0.0
    %957 = vmatpush1.msra.mxu0 0.0
    %958 = vmatprep.subr.mxu0 0.0
    %959 = vmatpush1.msra.mxu0 %v857
    %960 = vmatprep.subr.mxu0 0.0
    %961 = vmatpush1.msra.mxu0 %v832
    %962 = vmatprep.subr.mxu0 0.0
    %963 = vmatpush2.msra.mxu0 0.0
    %964 = vmatprep.subr.mxu0 0.0
    %965 = vmatpush2.msra.mxu0 0.0
    %966 = vmatprep.subr.mxu0 0.0
    %967 = vmatpush2.msra.mxu0 0.0
    %968 = vmatprep.subr.mxu0 0.0
    %969 = vmatpush2.msra.mxu0 0.0
    %970 = vmatprep.subr.mxu0 0.0
    %971 = vmatpush2.msra.mxu0 0.0
    %972 = vmatprep.subr.mxu0 0.0
    %973 = vmatpush2.msra.mxu0 0.0
    %974 = vmatprep.subr.mxu0 0.0
    %975 = vmatpush2.msra.mxu0 0.0
    %976 = vmatprep.subr.mxu0 0.0
    %977 = vmatpush2.msra.mxu0 0.0
    %978 = vmatprep.subr.mxu0 0.0
    %979 = vmatpush2.msra.mxu0 0.0
    %980 = vmatprep.subr.mxu0 0.0
    %981 = vmatpush2.msra.mxu0 0.0
    %982 = vmatprep.subr.mxu0 0.0
    %983 = vmatpush2.msra.mxu0 0.0
    %984 = vmatprep.subr.mxu0 0.0
    %985 = vmatpush2.msra.mxu0 0.0
    %986 = vmatprep.subr.mxu0 0.0
    %987 = vmatpush2.msra.mxu0 0.0
    %988 = vmatprep.subr.mxu0 0.0
    %989 = vmatpush2.msra.mxu0 0.0
    %990 = vmatprep.subr.mxu0 0.0
    %991 = vmatpush2.msra.mxu0 0.0
    %992 = vmatprep.subr.mxu0 0.0
    %993 = vmatpush2.msra.mxu0 0.0
    %994 = vmatprep.mubr.f32.mxu0 0.0
    %995 = vmatmul.mubr.f32.gmra.mxu0 %v848
    %v996 = vpop.f32.mrf.mxu0
    %v997 = vadd.f32 %v846, %v996
    %v998 = vpop.f32.mrf.mxu0
    %999 = vdwg.mxu0
    %v1003 = vcombine.low %v926, %v928
    %v1005 = vunpack.c.l.s4 1966171168
    %v1006 = vunpack.c.0.s8 %v1005
    %v1007 = vlaneseq
    %v1008 = vshrl.u32 %v1007, 7
    %v1009 = vsub.s32 %v1006, %v1008
    %v1010 = vrot.slane %v1003, %v1009
    %v1012 = vunpack.c.l.s4 1966171168
    %v1013 = vunpack.c.0.s8 %v1012
    %v1014 = vlaneseq
    %v1015 = vshrl.u32 %v1014, 7
    %v1016 = vsub.s32 %v1013, %v1015
    %v1017 = vrot.slane %v997, %v1016
    %v1018 = vcombine.low %v1010, %v1017
    %v1020 = vunpack.c.l.s4 1966171168
    %v1021 = vunpack.c.0.s8 %v1020
    %v1022 = vlaneseq
    %v1023 = vshrl.u32 %v1022, 7
    %v1024 = vsub.s32 %v1021, %v1023
    %v1025 = vrot.slane %v1018, %v1024
    %v1027 = vlaneseq
    %vm1028 = vcmp.ge.s32.totalorder %v1027, 0
    %vm1029 = vcmp.lt.s32.totalorder %v1027, 384
    %vm1030 = vmand %vm1028, %vm1029
    %1031 = vst.msk [vmem:[#allocation3] sm:$0x7] %vm1030, %v1025
    // Predicated region
    $region38: #{tpu_custom_call.1} parent=1 // pred_check
      _
    $region39: #{tpu_custom_call.1} parent=1 // pred_check_branch
      %1033 = sbr.rel (0) target = $region41
    $region40: #{tpu_custom_call.1} parent=1 // pred_region
      %s1035 = ssub.s32 48, 48
      %1036 = vsyncadd [#allocation4], %s1035
      %s1038 = sshll.u32 [#allocation3], 4
      %s1039 = int_to_ptr.vmem [resolvable:$true] %s1038
      %1041 = dma.vmem_to_hbm [thread:$0]  %s1039, 48, %s9, [#allocation4]
    $region41: #{tpu_custom_call.1} parent=1 // pred_fallthru
      _
    // Predicated region
    $region42: #{tpu_custom_call.1} parent=1 // pred_check
      _
    $region43: #{tpu_custom_call.1} parent=1 // pred_check_branch
      %1043 = sbr.rel (0) target = $region45
    $region44: #{tpu_custom_call.1} parent=1 // pred_region
      %1044 = dma.done [#allocation4], 48
    $region45: #{tpu_custom_call.1} parent=1 // pred_fallthru
      _
    %1045 = vsyncpa [#allocation4], 1

</llo_original>
